<compile_context>
chip_gen: v7x
topology: tpu7x:2x2x1
jax: 0.10.0
libtpu: 0.0.40
codegen_flags: <defaults>
</compile_context>

<pallas_src>
import math

import jax
import jax.numpy as jnp
from jax.experimental import pallas as pl
from jax.experimental.pallas import tpu as pltpu


def feature_regression_kernel(x_ref, w_ref, d_ref, b_ref, o_ref):
    """y = x @ W^T - x * diag(W) + b, computed on one batch tile in VMEM."""
    x = x_ref[...]
    # F.linear contraction without materializing W^T: contract x axis 1 with W axis 1.
    y = jax.lax.dot_general(
        x,
        w_ref[...],
        dimension_numbers=(((1,), (1,)), ((), ())),
        preferred_element_type=jnp.float32,
    )
    # Remove the diagonal contribution (equivalent to masking diag(W) to zero).
    y = y - x.astype(jnp.float32) * d_ref[...].astype(jnp.float32)
    # Bias add in f32, then a single cast to the output dtype.
    o_ref[...] = (y + b_ref[...].astype(jnp.float32)).astype(o_ref.dtype)


def feature_regression(x, W, b, *, tb_max=256, vmem_limit_bytes=64 * 1024 * 1024):
    """x: (B, N), W: (N, N), b: (N,) -> (B, N)."""
    B, N = x.shape

    # Lane-dense feature axis: pad N up to a multiple of 128 (zero padding is exact:
    # padded x columns contribute 0, padded output columns are sliced away).
    Np = ((N + 127) // 128) * 128

    # Batch tile: multiple of 8 sublanes, capped at tb_max.
    tb = min(tb_max, max(B, 1))
    tb = ((tb + 7) // 8) * 8
    Bp = ((B + tb - 1) // tb) * tb

    x_p = jnp.pad(x, ((0, Bp - B), (0, Np - N)))
    W_p = jnp.pad(W, ((0, Np - N), (0, Np - N)))
    d_p = jnp.diagonal(W_p).reshape(1, Np)          # diag(W) as a (1, Np) row
    b_p = jnp.pad(b, (0, Np - N)).reshape(1, Np)

    grid = (Bp // tb,)
    out_p = pl.pallas_call(
        feature_regression_kernel,
        out_shape=jax.ShapeDtypeStruct((Bp, Np), x.dtype),
        grid_spec=pltpu.PrefetchScalarGridSpec(
            num_scalar_prefetch=0,
            grid=grid,
            in_specs=[
                pl.BlockSpec((tb, Np), lambda i: (i, 0)),   # x tile (streams per step)
                pl.BlockSpec((Np, Np), lambda i: (0, 0)),   # W (grid-invariant)
                pl.BlockSpec((1, Np), lambda i: (0, 0)),    # diag(W)
                pl.BlockSpec((1, Np), lambda i: (0, 0)),    # bias
            ],
            out_specs=pl.BlockSpec((tb, Np), lambda i: (i, 0)),
        ),
        compiler_params=pltpu.CompilerParams(
            dimension_semantics=("parallel",),               # megacore-shardable on v7x
            vmem_limit_bytes=vmem_limit_bytes,
        ),
    )(x_p, W_p, d_p, b_p)

    return out_p[:B, :N]


if __name__ == "__main__":
    # Small shapes consistent with the module: batch=8, input_size=32.
    batch, input_size = 8, 32
    key = jax.random.PRNGKey(0)
    kx, kw, kb = jax.random.split(key, 3)

    # Deterministic parameter init mirroring reset_parameters():
    # uniform(-stdv, stdv) with stdv = 1/sqrt(input_size).
    stdv = 1.0 / math.sqrt(input_size)
    W = jax.random.uniform(kw, (input_size, input_size), jnp.float32,
                           minval=-stdv, maxval=stdv)
    b = jax.random.uniform(kb, (input_size,), jnp.float32,
                           minval=-stdv, maxval=stdv)
    x = jax.random.normal(kx, (batch, input_size), jnp.float32)

    out = feature_regression(x, W, b)
    out = jax.block_until_ready(out)

    # Pure-JAX reference (masked-matmul formulation of the PyTorch module).
    m = jnp.ones((input_size, input_size), jnp.float32) - jnp.eye(input_size,
                                                                  dtype=jnp.float32)
    ref = x @ (W * m).T + b
    assert out.shape == (batch, input_size)
    assert jnp.allclose(out, ref, atol=1e-5, rtol=1e-5), "mismatch vs reference"

    print("KERNEL_OK")
</pallas_src>

<mosaic_0001>
module attributes {stable_mosaic.version = 11 : i64} {
  func.func @feature_regression_kernel(%arg0: i32, %arg1: memref<8x128xf32, #tpu.memory_space<vmem>>, %arg2: memref<128x128xf32, #tpu.memory_space<vmem>>, %arg3: memref<1x128xf32, #tpu.memory_space<vmem>>, %arg4: memref<1x128xf32, #tpu.memory_space<vmem>>, %arg5: memref<8x128xf32, #tpu.memory_space<vmem>>) attributes {dimension_semantics = [#tpu.dimension_semantics<parallel>], iteration_bounds = array<i64: 1>, scalar_prefetch = 0 : i64, scratch_operands = 0 : i64, tpu.core_type = #tpu.core_type<tc>, window_params = [{transform_indices = @transform_0, window_bounds = array<i64: 8, 128>}, {pipeline_mode = #tpu.pipeline_mode<synchronous>, transform_indices = @transform_1, window_bounds = array<i64: 128, 128>}, {pipeline_mode = #tpu.pipeline_mode<synchronous>, transform_indices = @transform_2, window_bounds = array<i64: 1, 128>}, {pipeline_mode = #tpu.pipeline_mode<synchronous>, transform_indices = @transform_3, window_bounds = array<i64: 1, 128>}, {transform_indices = @transform_4, window_bounds = array<i64: 8, 128>}]} {
    %c0 = arith.constant 0 : index
    %c0_0 = arith.constant 0 : index
    %0 = vector.load %arg1[%c0, %c0_0] : memref<8x128xf32, #tpu.memory_space<vmem>>, vector<8x128xf32>
    %c0_1 = arith.constant 0 : index
    %c0_2 = arith.constant 0 : index
    %1 = vector.load %arg2[%c0_1, %c0_2] : memref<128x128xf32, #tpu.memory_space<vmem>>, vector<128x128xf32>
    %cst = arith.constant dense<0.000000e+00> : vector<8x128xf32>
    %2 = tpu.matmul %0, %1, %cst {dimension_numbers = #tpu.dot_dimension_numbers<[1], [1], [0], [0], [0, 0, 1, 0], [], []>} : vector<8x128xf32>, vector<128x128xf32>, vector<8x128xf32> -> vector<8x128xf32>
    %c0_3 = arith.constant 0 : index
    %c0_4 = arith.constant 0 : index
    %3 = vector.load %arg3[%c0_3, %c0_4] : memref<1x128xf32, #tpu.memory_space<vmem>>, vector<1x128xf32>
    %4 = vector.broadcast %3 : vector<1x128xf32> to vector<8x128xf32>
    %5 = arith.mulf %0, %4 : vector<8x128xf32>
    %6 = arith.subf %2, %5 : vector<8x128xf32>
    %c0_5 = arith.constant 0 : index
    %c0_6 = arith.constant 0 : index
    %7 = vector.load %arg4[%c0_5, %c0_6] : memref<1x128xf32, #tpu.memory_space<vmem>>, vector<1x128xf32>
    %8 = vector.broadcast %7 : vector<1x128xf32> to vector<8x128xf32>
    %9 = arith.addf %6, %8 : vector<8x128xf32>
    %c0_7 = arith.constant 0 : index
    %c0_8 = arith.constant 0 : index
    %10 = vector.load %arg5[%c0_7, %c0_8] : memref<8x128xf32, #tpu.memory_space<vmem>>, vector<8x128xf32>
    tpu.vector_store %arg5[%c0_7, %c0_8], %9 {strides = array<i32>} : memref<8x128xf32, #tpu.memory_space<vmem>>, vector<8x128xf32>,
    return
  }
  func.func @transform_0(%arg0: i32) -> (i32, i32) {
    %c0_i32 = arith.constant 0 : i32
    %c0_i32_0 = arith.constant 0 : i32
    return %arg0, %c0_i32 : i32, i32
  }
  func.func @transform_1(%arg0: i32) -> (i32, i32) {
    %c0_i32 = arith.constant 0 : i32
    %c0_i32_0 = arith.constant 0 : i32
    %c0_i32_1 = arith.constant 0 : i32
    return %c0_i32, %c0_i32_0 : i32, i32
  }
  func.func @transform_2(%arg0: i32) -> (i32, i32) {
    %c0_i32 = arith.constant 0 : i32
    %c0_i32_0 = arith.constant 0 : i32
    %c0_i32_1 = arith.constant 0 : i32
    return %c0_i32, %c0_i32_0 : i32, i32
  }
  func.func @transform_3(%arg0: i32) -> (i32, i32) {
    %c0_i32 = arith.constant 0 : i32
    %c0_i32_0 = arith.constant 0 : i32
    %c0_i32_1 = arith.constant 0 : i32
    return %c0_i32, %c0_i32_0 : i32, i32
  }
  func.func @transform_4(%arg0: i32) -> (i32, i32) {
    %c0_i32 = arith.constant 0 : i32
    %c0_i32_0 = arith.constant 0 : i32
    return %arg0, %c0_i32 : i32, i32
  }
}

</mosaic_0001>

<llo_original>
// kernel: tpu_custom_call.1
$region0: #{tpu_custom_call.1}
  #allocation0 [shape = 'u32[]', space=smem, size = 0x4, offset = 0x4, fixed_abs, tag = 'smem constant byte address 0x4 - core index']
  #allocation1 [shape = 'u32[144,128]{1,0:T(1,128)}', space=vmem, size = 0x12000, scoped, tag = 'internal scratch']
  %s0 = inlined_call_operand.hbm [shape: f32[8,128], index: 0, kind: input, shape index: {}]
  %s1 = inlined_call_operand.hbm [shape: f32[128,128], index: 1, kind: input, shape index: {}]
  %s2 = inlined_call_operand.hbm [shape: f32[1,128], index: 2, kind: input, shape index: {}]
  %s3 = inlined_call_operand.hbm [shape: f32[1,128], index: 3, kind: input, shape index: {}]
  %s4 = inlined_call_operand.hbm [shape: f32[8,128], index: 4, kind: output, shape index: {}]
  %s5 = sld [smem:[#allocation0]]
  $region42: #{tpu_custom_call.1} parent=0
    _
  %s7 = ssub.s32 1, %s5
  %s8 = scalar_select 0, %s7, %s5
  $region1: #{tpu_custom_call.1} parent=0
    #allocation2 [shape = 'u8[4096]{0}', space=vmem, size = 0x1000, scoped, tag = 'input window, operand 0, single buffered']
    #allocation3 [shape = 's32[1]{0}', space=sflag, size = 0x4, scoped, tag = 'scoped memory for tpu_custom_call.1']
    #allocation4 [shape = 's32[1]{0}', space=sflag, size = 0x4, scoped, tag = 'scoped memory for tpu_custom_call.1']
    #allocation5 [shape = 'u8[65536]{0}', space=vmem, size = 0x10000, scoped, tag = 'input window, operand 1, single buffered']
    #allocation6 [shape = 's32[1]{0}', space=sflag, size = 0x4, scoped, tag = 'scoped memory for tpu_custom_call.1']
    #allocation7 [shape = 'u8[512]{0}', space=vmem, size = 0x400, scoped, tag = 'input window, operand 2, single buffered']
    #allocation8 [shape = 'u8[512]{0}', space=vmem, size = 0x400, scoped, tag = 'input window, operand 3, single buffered']
    #allocation9 [shape = 's32[1]{0}', space=sflag, size = 0x4, scoped, tag = 'scoped memory for tpu_custom_call.1']
    #allocation10 [shape = 'u8[4096]{0}', space=vmem, size = 0x1000, scoped, tag = 'output window, operand 0, single buffered']
    %9 = vsyncpa [#allocation3], 0
    %10 = vsyncpa [#allocation6], 0
    %11 = vsyncpa [#allocation9], 0
    %12 = vsyncpa [#allocation4], 0
    // Predicated region
    $region2: #{tpu_custom_call.1} parent=1 // pred_check
      _
    $region3: #{tpu_custom_call.1} parent=1 // pred_check_branch
      %14 = sbr.rel (0) target = $region5
    $region4: #{tpu_custom_call.1} parent=1 // pred_region
      %s16 = ssub.s32 128, 128
      %17 = vsyncadd [#allocation3], %s16
      %s19 = sshll.u32 [#allocation2], 4
      %s20 = int_to_ptr.vmem [resolvable:$true] %s19
      %22 = dma.hbm_to_vmem [thread:$0]  %s0, 128, %s20, [#allocation3]
    $region5: #{tpu_custom_call.1} parent=1 // pred_fallthru
      _
    // Predicated region
    $region6: #{tpu_custom_call.1} parent=1 // pred_check
      _
    $region7: #{tpu_custom_call.1} parent=1 // pred_check_branch
      %24 = sbr.rel (0) target = $region9
    $region8: #{tpu_custom_call.1} parent=1 // pred_region
      %s26 = ssub.s32 2048, 2048
      %27 = vsyncadd [#allocation6], %s26
      %s28 = sshll.u32 [#allocation5], 4
      %s29 = int_to_ptr.vmem [resolvable:$true] %s28
      %34 = dma.hbm_to_vmem [thread:$0]  %s1, 2048, %s29, [#allocation6], 128, 128, 8
    $region9: #{tpu_custom_call.1} parent=1 // pred_fallthru
      _
    // Predicated region
    $region10: #{tpu_custom_call.1} parent=1 // pred_check
      _
    $region11: #{tpu_custom_call.1} parent=1 // pred_check_branch
      %36 = sbr.rel (0) target = $region13
    $region12: #{tpu_custom_call.1} parent=1 // pred_region
      %s38 = ssub.s32 16, 16
      %39 = vsyncadd [#allocation6], %s38
      %s41 = sshll.u32 [#allocation7], 4
      %s42 = int_to_ptr.vmem [resolvable:$true] %s41
      %44 = dma.hbm_to_vmem [thread:$0]  %s2, 16, %s42, [#allocation6]
    $region13: #{tpu_custom_call.1} parent=1 // pred_fallthru
      _
    // Predicated region
    $region14: #{tpu_custom_call.1} parent=1 // pred_check
      _
    $region15: #{tpu_custom_call.1} parent=1 // pred_check_branch
      %46 = sbr.rel (0) target = $region17
    $region16: #{tpu_custom_call.1} parent=1 // pred_region
      %s48 = ssub.s32 16, 16
      %49 = vsyncadd [#allocation9], %s48
      %s51 = sshll.u32 [#allocation8], 4
      %s52 = int_to_ptr.vmem [resolvable:$true] %s51
      %54 = dma.hbm_to_vmem [thread:$0]  %s3, 16, %s52, [#allocation9]
    $region17: #{tpu_custom_call.1} parent=1 // pred_fallthru
      _
    // Predicated region
    $region18: #{tpu_custom_call.1} parent=1 // pred_check
      _
    $region19: #{tpu_custom_call.1} parent=1 // pred_check_branch
      %56 = sbr.rel (0) target = $region21
    $region20: #{tpu_custom_call.1} parent=1 // pred_region
      %57 = dma.done [#allocation3], 128
    $region21: #{tpu_custom_call.1} parent=1 // pred_fallthru
      _
    // Predicated region
    $region22: #{tpu_custom_call.1} parent=1 // pred_check
      _
    $region23: #{tpu_custom_call.1} parent=1 // pred_check_branch
      %59 = sbr.rel (0) target = $region25
    $region24: #{tpu_custom_call.1} parent=1 // pred_region
      %60 = dma.done [#allocation6], 2048
    $region25: #{tpu_custom_call.1} parent=1 // pred_fallthru
      _
    // Predicated region
    $region26: #{tpu_custom_call.1} parent=1 // pred_check
      _
    $region27: #{tpu_custom_call.1} parent=1 // pred_check_branch
      %62 = sbr.rel (0) target = $region29
    $region28: #{tpu_custom_call.1} parent=1 // pred_region
      %63 = dma.done [#allocation6], 16
    $region29: #{tpu_custom_call.1} parent=1 // pred_fallthru
      _
    // Predicated region
    $region30: #{tpu_custom_call.1} parent=1 // pred_check
      _
    $region31: #{tpu_custom_call.1} parent=1 // pred_check_branch
      %65 = sbr.rel (0) target = $region33
    $region32: #{tpu_custom_call.1} parent=1 // pred_region
      %66 = dma.done [#allocation9], 16
    $region33: #{tpu_custom_call.1} parent=1 // pred_fallthru
      _
    %v67 = vld [vmem:[#allocation2] sm:$0xff]
    %v68 = vld [vmem:[#allocation5] sm:$0xff]
    %v69 = vld [vmem:[#allocation5 + $0x8] sm:$0xff]
    %v70 = vld [vmem:[#allocation5 + $0x10] sm:$0xff]
    %v71 = vld [vmem:[#allocation5 + $0x18] sm:$0xff]
    %v72 = vld [vmem:[#allocation5 + $0x20] sm:$0xff]
    %v73 = vld [vmem:[#allocation5 + $0x28] sm:$0xff]
    %v74 = vld [vmem:[#allocation5 + $0x30] sm:$0xff]
    %v75 = vld [vmem:[#allocation5 + $0x38] sm:$0xff]
    %v76 = vld [vmem:[#allocation5 + $0x40] sm:$0xff]
    %v77 = vld [vmem:[#allocation5 + $0x48] sm:$0xff]
    %v78 = vld [vmem:[#allocation5 + $0x50] sm:$0xff]
    %v79 = vld [vmem:[#allocation5 + $0x58] sm:$0xff]
    %v80 = vld [vmem:[#allocation5 + $0x60] sm:$0xff]
    %v81 = vld [vmem:[#allocation5 + $0x68] sm:$0xff]
    %v82 = vld [vmem:[#allocation5 + $0x70] sm:$0xff]
    %v83 = vld [vmem:[#allocation5 + $0x78] sm:$0xff]
    %84 = vmatprep.subr.mxu0 0.0
    %85 = vmatpush1.xpose.msra.mxu0 %v68
    %86 = vmatprep.subr.mxu0 0.0
    %87 = vmatpush1.xpose.msra.mxu0 %v69
    %88 = vmatprep.subr.mxu0 0.0
    %89 = vmatpush1.xpose.msra.mxu0 %v70
    %90 = vmatprep.subr.mxu0 0.0
    %91 = vmatpush1.xpose.msra.mxu0 %v71
    %92 = vmatprep.subr.mxu0 0.0
    %93 = vmatpush1.xpose.msra.mxu0 %v72
    %94 = vmatprep.subr.mxu0 0.0
    %95 = vmatpush1.xpose.msra.mxu0 %v73
    %96 = vmatprep.subr.mxu0 0.0
    %97 = vmatpush1.xpose.msra.mxu0 %v74
    %98 = vmatprep.subr.mxu0 0.0
    %99 = vmatpush1.xpose.msra.mxu0 %v75
    %100 = vmatprep.subr.mxu0 0.0
    %101 = vmatpush1.xpose.msra.mxu0 %v76
    %102 = vmatprep.subr.mxu0 0.0
    %103 = vmatpush1.xpose.msra.mxu0 %v77
    %104 = vmatprep.subr.mxu0 0.0
    %105 = vmatpush1.xpose.msra.mxu0 %v78
    %106 = vmatprep.subr.mxu0 0.0
    %107 = vmatpush1.xpose.msra.mxu0 %v79
    %108 = vmatprep.subr.mxu0 0.0
    %109 = vmatpush1.xpose.msra.mxu0 %v80
    %110 = vmatprep.subr.mxu0 0.0
    %111 = vmatpush1.xpose.msra.mxu0 %v81
    %112 = vmatprep.subr.mxu0 0.0
    %113 = vmatpush1.xpose.msra.mxu0 %v82
    %114 = vmatprep.subr.mxu0 0.0
    %115 = vmatpush1.xpose.msra.mxu0 %v83
    %116 = vmatprep.subr.mxu0 0.0
    %117 = vmatpush1.xpose.msra.mxu0 0.0
    %118 = vmatprep.subr.mxu0 0.0
    %119 = vmatpush1.xpose.msra.mxu0 0.0
    %120 = vmatprep.subr.mxu0 0.0
    %121 = vmatpush1.xpose.msra.mxu0 0.0
    %122 = vmatprep.subr.mxu0 0.0
    %123 = vmatpush1.xpose.msra.mxu0 0.0
    %124 = vmatprep.subr.mxu0 0.0
    %125 = vmatpush1.xpose.msra.mxu0 0.0
    %126 = vmatprep.subr.mxu0 0.0
    %127 = vmatpush1.xpose.msra.mxu0 0.0
    %128 = vmatprep.subr.mxu0 0.0
    %129 = vmatpush1.xpose.msra.mxu0 0.0
    %130 = vmatprep.subr.mxu0 0.0
    %131 = vmatpush1.xpose.msra.mxu0 0.0
    %132 = vmatprep.subr.mxu0 0.0
    %133 = vmatpush1.xpose.msra.mxu0 0.0
    %134 = vmatprep.subr.mxu0 0.0
    %135 = vmatpush1.xpose.msra.mxu0 0.0
    %136 = vmatprep.subr.mxu0 0.0
    %137 = vmatpush1.xpose.msra.mxu0 0.0
    %138 = vmatprep.subr.mxu0 0.0
    %139 = vmatpush1.xpose.msra.mxu0 0.0
    %140 = vmatprep.subr.mxu0 0.0
    %141 = vmatpush1.xpose.msra.mxu0 0.0
    %142 = vmatprep.subr.mxu0 0.0
    %143 = vmatpush1.xpose.msra.mxu0 0.0
    %144 = vmatprep.subr.mxu0 0.0
    %145 = vmatpush1.xpose.msra.mxu0 0.0
    %146 = vmatprep.subr.mxu0 0.0
    %147 = vmatpush1.xpose.msra.mxu0 0.0
    %148 = vmatprep.mubr.f32.mxu0 0.0
    %149 = vmatmul.mubr.f32.gmra.mrb[0].mxu0 %v67
    %v150 = vpop.f32.mrb[0].mxu0
    %v151 = vadd.f32 0.0, %v150
    %v152 = vpop.f32.mrb[0].mxu0
    %153 = vdwg.mxu0
    %v154 = vld [vmem:[#allocation7] sm:$0x1]
    %v156 = vlaneseq
    %v157 = vshrl.u32 %v156, 7
    %v158 = vsub.s32 0, %v157
    %v159 = vrot.slane %v154, %v158
    %v161 = vmul.f32 %v67, %v159
    %v162 = vsub.f32 %v151, %v161
    %v163 = vld [vmem:[#allocation8] sm:$0x1]
    %v165 = vlaneseq
    %v166 = vshrl.u32 %v165, 7
    %v167 = vsub.s32 0, %v166
    %v168 = vrot.slane %v163, %v167
    %v170 = vadd.f32 %v162, %v168
    %171 = vst [vmem:[#allocation10] sm:$0xff] %v170
    // Predicated region
    $region34: #{tpu_custom_call.1} parent=1 // pred_check
      _
    $region35: #{tpu_custom_call.1} parent=1 // pred_check_branch
      %173 = sbr.rel (0) target = $region37
    $region36: #{tpu_custom_call.1} parent=1 // pred_region
      %s175 = ssub.s32 128, 128
      %176 = vsyncadd [#allocation4], %s175
      %s178 = sshll.u32 [#allocation10], 4
      %s179 = int_to_ptr.vmem [resolvable:$true] %s178
      %181 = dma.vmem_to_hbm [thread:$0]  %s179, 128, %s4, [#allocation4]
    $region37: #{tpu_custom_call.1} parent=1 // pred_fallthru
      _
    // Predicated region
    $region38: #{tpu_custom_call.1} parent=1 // pred_check
      _
    $region39: #{tpu_custom_call.1} parent=1 // pred_check_branch
      %183 = sbr.rel (0) target = $region41
    $region40: #{tpu_custom_call.1} parent=1 // pred_region
      %184 = dma.done [#allocation4], 128
    $region41: #{tpu_custom_call.1} parent=1 // pred_fallthru
      _
    %185 = vsyncpa [#allocation3], 1
    %186 = vsyncpa [#allocation6], 1
    %187 = vsyncpa [#allocation9], 1
    %188 = vsyncpa [#allocation4], 1

</llo_original>
